<compile_context>
chip_gen: v7x
topology: tpu7x:2x2x1
jax: 0.10.0
libtpu: 0.0.40
codegen_flags: <defaults>
</compile_context>

<pallas_src>
import jax
import jax.numpy as jnp
from jax.experimental import pallas as pl
from jax.experimental.pallas import tpu as pltpu


def _round_up(x, m):
    return ((x + m - 1) // m) * m


# -----------------------------------------------------------------------------
# Single-block path: the whole (padded) problem is one VMEM tile.  No grid means
# no software-pipeline prologue / double-buffer allocation -- pure fused op.
# -----------------------------------------------------------------------------
def _fused_single_block_kernel(x_ref, w_ref, b_ref, x2_ref, o_ref):
    acc = jnp.dot(x_ref[...], w_ref[...], preferred_element_type=jnp.float32)
    acc = acc + b_ref[...] + x2_ref[...]          # f32 epilogue (bias + residual)
    o_ref[...] = jnp.maximum(acc, 0.0).astype(o_ref.dtype)


# -----------------------------------------------------------------------------
# Tiled path: 3-D grid (M/tm, N/tn, K/tk), f32 accumulator scratch, init at
# k == 0, bias + residual + relu fused in the k == last epilogue.  Bias and x2
# blocks are resident across K (their index_map ignores k).
# -----------------------------------------------------------------------------
def _fused_tiled_kernel(x_ref, w_ref, b_ref, x2_ref, o_ref, acc_ref):
    k = pl.program_id(2)

    @pl.when(k == 0)
    def _():
        acc_ref[...] = jnp.zeros_like(acc_ref)

    acc_ref[...] += jnp.dot(x_ref[...], w_ref[...],
                            preferred_element_type=jnp.float32)

    @pl.when(k == pl.num_programs(2) - 1)
    def _():
        v = acc_ref[...] + b_ref[...] + x2_ref[...]   # keep epilogue in f32
        o_ref[...] = jnp.maximum(v, 0.0).astype(o_ref.dtype)


def linear_add_relu(x1, w, b, x2, *, use_bf16_mxu=False,
                    tm=256, tn=256, tk=256):
    """relu(x1 @ w + b + x2); w is [Din, Dout], b is [Dout] or [1, Dout]."""
    B, Din = x1.shape
    Dout = w.shape[1]
    out_dtype = x1.dtype
    b = b.reshape(1, Dout)

    # Tile sizes: sublane-aligned M tile, lane-dense (multiple-of-128) N/K tiles.
    tm = min(tm, _round_up(B, 8))
    tn = min(tn, _round_up(Dout, 128))
    tk = min(tk, _round_up(Din, 128))

    # Zero-pad every dim up to a multiple of its tile (zeros don't change the
    # matmul / bias / relu result; padded rows/cols are sliced off at the end).
    Bp, Kp, Np = _round_up(B, tm), _round_up(Din, tk), _round_up(Dout, tn)
    xp = jnp.pad(x1, ((0, Bp - B), (0, Kp - Din)))
    wp = jnp.pad(w, ((0, Kp - Din), (0, Np - Dout)))
    bp = jnp.pad(b, ((0, 0), (0, Np - Dout)))
    x2p = jnp.pad(x2, ((0, Bp - B), (0, Np - Dout)))

    if use_bf16_mxu:
        # bf16 MXU operands (fast path on v6e/v7x); accumulation + epilogue stay f32.
        xp = xp.astype(jnp.bfloat16)
        wp = wp.astype(jnp.bfloat16)

    nbytes = lambda a: a.size * a.dtype.itemsize
    cost = pl.CostEstimate(
        flops=2 * Bp * Kp * Np,
        transcendentals=0,
        bytes_accessed=(nbytes(xp) + nbytes(wp) + nbytes(bp) + nbytes(x2p)
                        + Bp * Np * jnp.dtype(out_dtype).itemsize),
    )

    grid = (Bp // tm, Np // tn, Kp // tk)

    if grid == (1, 1, 1):
        # Single tile: skip the grid / pipelining machinery entirely.
        out_p = pl.pallas_call(
            _fused_single_block_kernel,
            out_shape=jax.ShapeDtypeStruct((Bp, Np), out_dtype),
            in_specs=[pl.BlockSpec(memory_space=pltpu.MemorySpace.VMEM)] * 4,
            out_specs=pl.BlockSpec(memory_space=pltpu.MemorySpace.VMEM),
            cost_estimate=cost,
        )(xp, wp, bp, x2p)
    else:
        out_p = pl.pallas_call(
            _fused_tiled_kernel,
            out_shape=jax.ShapeDtypeStruct((Bp, Np), out_dtype),
            grid_spec=pltpu.PrefetchScalarGridSpec(
                num_scalar_prefetch=0,
                grid=grid,
                in_specs=[
                    pl.BlockSpec((tm, tk), lambda i, j, k: (i, k)),
                    pl.BlockSpec((tk, tn), lambda i, j, k: (k, j)),
                    # Bias / residual tiles are resident across the K axis.
                    pl.BlockSpec((1, tn), lambda i, j, k: (0, j)),
                    pl.BlockSpec((tm, tn), lambda i, j, k: (i, j)),
                ],
                out_specs=pl.BlockSpec((tm, tn), lambda i, j, k: (i, j)),
                scratch_shapes=[pltpu.VMEM((tm, tn), jnp.float32)],
            ),
            compiler_params=pltpu.CompilerParams(
                # M/N parallel -> shards across the 2 TensorCores on v7x;
                # K last + arbitrary -> accumulator carried across it.
                dimension_semantics=("parallel", "parallel", "arbitrary"),
                vmem_limit_bytes=32 * 1024 * 1024,
            ),
            cost_estimate=cost,
        )(xp, wp, bp, x2p)

    return out_p[:B, :Dout]


if __name__ == "__main__":
    key = jax.random.PRNGKey(0)
    k_x1, k_x2, k_w, k_b, k_lx, k_lx2, k_lw, k_lb = jax.random.split(key, 8)

    # ---- module shapes: Linear(32, 16), x1 = (1, 32), x2 = (1, 16) -----------
    B, Din, Dout = 1, 32, 16
    x1 = jax.random.normal(k_x1, (B, Din), dtype=jnp.float32)
    x2 = jax.random.normal(k_x2, (B, Dout), dtype=jnp.float32)
    bound = 1.0 / jnp.sqrt(Din)
    w = jax.random.uniform(k_w, (Din, Dout), minval=-bound, maxval=bound,
                           dtype=jnp.float32)        # stored as [in, out]
    b = jax.random.uniform(k_b, (Dout,), minval=-bound, maxval=bound,
                           dtype=jnp.float32)

    out = jax.block_until_ready(linear_add_relu(x1, w, b, x2))
    ref = jnp.maximum(x1 @ w + b[None, :] + x2, 0.0)
    assert out.shape == (B, Dout)
    assert jnp.allclose(out, ref, atol=1e-5, rtol=1e-5)

    # ---- larger shape to exercise the tiled (multi-block, K-accumulate) path --
    Bl, Dinl, Doutl = 256, 512, 384
    xl = jax.random.normal(k_lx, (Bl, Dinl), dtype=jnp.float32)
    x2l = jax.random.normal(k_lx2, (Bl, Doutl), dtype=jnp.float32)
    boundl = 1.0 / jnp.sqrt(Dinl)
    wl = jax.random.uniform(k_lw, (Dinl, Doutl), minval=-boundl, maxval=boundl,
                            dtype=jnp.float32)
    bl = jax.random.uniform(k_lb, (Doutl,), minval=-boundl, maxval=boundl,
                            dtype=jnp.float32)

    out_l = jax.block_until_ready(linear_add_relu(xl, wl, bl, x2l))
    ref_l = jnp.maximum(xl @ wl + bl[None, :] + x2l, 0.0)
    assert out_l.shape == (Bl, Doutl)
    assert jnp.allclose(out_l, ref_l, atol=2e-2, rtol=2e-2)

    print("KERNEL_OK")
</pallas_src>

<mosaic_0001>
module attributes {stable_mosaic.version = 11 : i64} {
  func.func @_fused_single_block_kernel(%arg0: memref<8x128xf32, #tpu.memory_space<vmem>>, %arg1: memref<128x128xf32, #tpu.memory_space<vmem>>, %arg2: memref<1x128xf32, #tpu.memory_space<vmem>>, %arg3: memref<8x128xf32, #tpu.memory_space<vmem>>, %arg4: memref<8x128xf32, #tpu.memory_space<vmem>>) attributes {dimension_semantics = [], scalar_prefetch = 0 : i64, scratch_operands = 0 : i64, tpu.core_type = #tpu.core_type<tc>} {
    %c0 = arith.constant 0 : index
    %c0_0 = arith.constant 0 : index
    %0 = vector.load %arg0[%c0, %c0_0] : memref<8x128xf32, #tpu.memory_space<vmem>>, vector<8x128xf32>
    %c0_1 = arith.constant 0 : index
    %c0_2 = arith.constant 0 : index
    %1 = vector.load %arg1[%c0_1, %c0_2] : memref<128x128xf32, #tpu.memory_space<vmem>>, vector<128x128xf32>
    %cst = arith.constant dense<0.000000e+00> : vector<8x128xf32>
    %2 = tpu.matmul %0, %1, %cst {dimension_numbers = #tpu.dot_dimension_numbers<[1], [0], [0], [1], [0, 0, 1, 1], [], []>} : vector<8x128xf32>, vector<128x128xf32>, vector<8x128xf32> -> vector<8x128xf32>
    %c0_3 = arith.constant 0 : index
    %c0_4 = arith.constant 0 : index
    %3 = vector.load %arg2[%c0_3, %c0_4] : memref<1x128xf32, #tpu.memory_space<vmem>>, vector<1x128xf32>
    %4 = vector.broadcast %3 : vector<1x128xf32> to vector<8x128xf32>
    %5 = arith.addf %2, %4 : vector<8x128xf32>
    %c0_5 = arith.constant 0 : index
    %c0_6 = arith.constant 0 : index
    %6 = vector.load %arg3[%c0_5, %c0_6] : memref<8x128xf32, #tpu.memory_space<vmem>>, vector<8x128xf32>
    %7 = arith.addf %5, %6 : vector<8x128xf32>
    %cst_7 = arith.constant 0.000000e+00 : f32
    %8 = vector.broadcast %cst_7 : f32 to vector<8x128xf32>
    %9 = arith.maximumf %7, %8 : vector<8x128xf32>
    %c0_8 = arith.constant 0 : index
    %c0_9 = arith.constant 0 : index
    %10 = vector.load %arg4[%c0_8, %c0_9] : memref<8x128xf32, #tpu.memory_space<vmem>>, vector<8x128xf32>
    tpu.vector_store %arg4[%c0_8, %c0_9], %9 {strides = array<i32>} : memref<8x128xf32, #tpu.memory_space<vmem>>, vector<8x128xf32>,
    return
  }
}

</mosaic_0001>

<llo_original>
// kernel: tpu_custom_call.1
$region0: #{tpu_custom_call.1}
  #allocation0 [shape = 'u32[]', space=smem, size = 0x4, offset = 0x4, fixed_abs, tag = 'smem constant byte address 0x4 - core index']
  #allocation1 [shape = 'u32[144,128]{1,0:T(1,128)}', space=vmem, size = 0x12000, scoped, tag = 'internal scratch']
  %s0 = inlined_call_operand.hbm [shape: f32[8,128], index: 0, kind: input, shape index: {}]
  %s1 = inlined_call_operand.hbm [shape: f32[128,128], index: 1, kind: input, shape index: {}]
  %s2 = inlined_call_operand.vmem [shape: f32[1,128], index: 2, kind: input, shape index: {}]
  %s3 = inlined_call_operand.vmem [shape: f32[8,128], index: 3, kind: input, shape index: {}]
  %s4 = inlined_call_operand.hbm [shape: f32[8,128], index: 4, kind: output, shape index: {}]
  %s5 = sld [smem:[#allocation0]]
  $region34: #{tpu_custom_call.1} parent=0
    _
  %s7 = ssub.s32 1, %s5
  %s8 = scalar_select 0, %s7, %s5
  $region1: #{tpu_custom_call.1} parent=0
    #allocation2 [shape = 'u8[4096]{0}', space=vmem, size = 0x1000, scoped, tag = 'input window, operand 0, single buffered']
    #allocation3 [shape = 's32[1]{0}', space=sflag, size = 0x4, scoped, tag = 'scoped memory for tpu_custom_call.1']
    #allocation4 [shape = 's32[1]{0}', space=sflag, size = 0x4, scoped, tag = 'scoped memory for tpu_custom_call.1']
    #allocation5 [shape = 'u8[65536]{0}', space=vmem, size = 0x10000, scoped, tag = 'input window, operand 1, single buffered']
    #allocation6 [shape = 's32[1]{0}', space=sflag, size = 0x4, scoped, tag = 'scoped memory for tpu_custom_call.1']
    #allocation7 [shape = 'u8[4096]{0}', space=vmem, size = 0x1000, scoped, tag = 'output window, operand 0, single buffered']
    %9 = vsyncpa [#allocation3], 0
    %10 = vsyncpa [#allocation6], 0
    %11 = vsyncpa [#allocation4], 0
    // Predicated region
    $region2: #{tpu_custom_call.1} parent=1 // pred_check
      _
    $region3: #{tpu_custom_call.1} parent=1 // pred_check_branch
      %13 = sbr.rel (0) target = $region5
    $region4: #{tpu_custom_call.1} parent=1 // pred_region
      %s15 = ssub.s32 128, 128
      %16 = vsyncadd [#allocation3], %s15
      %s18 = sshll.u32 [#allocation2], 4
      %s19 = int_to_ptr.vmem [resolvable:$true] %s18
      %21 = dma.hbm_to_vmem [thread:$0]  %s0, 128, %s19, [#allocation3]
    $region5: #{tpu_custom_call.1} parent=1 // pred_fallthru
      _
    // Predicated region
    $region6: #{tpu_custom_call.1} parent=1 // pred_check
      _
    $region7: #{tpu_custom_call.1} parent=1 // pred_check_branch
      %23 = sbr.rel (0) target = $region9
    $region8: #{tpu_custom_call.1} parent=1 // pred_region
      %s25 = ssub.s32 2048, 2048
      %26 = vsyncadd [#allocation6], %s25
      %s27 = sshll.u32 [#allocation5], 4
      %s28 = int_to_ptr.vmem [resolvable:$true] %s27
      %33 = dma.hbm_to_vmem [thread:$0]  %s1, 2048, %s28, [#allocation6], 128, 128, 8
    $region9: #{tpu_custom_call.1} parent=1 // pred_fallthru
      _
    // Predicated region
    $region10: #{tpu_custom_call.1} parent=1 // pred_check
      _
    $region11: #{tpu_custom_call.1} parent=1 // pred_check_branch
      %35 = sbr.rel (0) target = $region13
    $region12: #{tpu_custom_call.1} parent=1 // pred_region
      _
    $region13: #{tpu_custom_call.1} parent=1 // pred_fallthru
      _
    // Predicated region
    $region14: #{tpu_custom_call.1} parent=1 // pred_check
      _
    $region15: #{tpu_custom_call.1} parent=1 // pred_check_branch
      %37 = sbr.rel (0) target = $region17
    $region16: #{tpu_custom_call.1} parent=1 // pred_region
      _
    $region17: #{tpu_custom_call.1} parent=1 // pred_fallthru
      _
    // Predicated region
    $region18: #{tpu_custom_call.1} parent=1 // pred_check
      _
    $region19: #{tpu_custom_call.1} parent=1 // pred_check_branch
      %39 = sbr.rel (0) target = $region21
    $region20: #{tpu_custom_call.1} parent=1 // pred_region
      %40 = dma.done [#allocation3], 128
    $region21: #{tpu_custom_call.1} parent=1 // pred_fallthru
      _
    // Predicated region
    $region22: #{tpu_custom_call.1} parent=1 // pred_check
      _
    $region23: #{tpu_custom_call.1} parent=1 // pred_check_branch
      %42 = sbr.rel (0) target = $region25
    $region24: #{tpu_custom_call.1} parent=1 // pred_region
      %43 = dma.done [#allocation6], 2048
    $region25: #{tpu_custom_call.1} parent=1 // pred_fallthru
      _
    %v44 = vld [vmem:[#allocation2] sm:$0xff]
    %v45 = vld [vmem:[#allocation5] sm:$0xff]
    %v46 = vld [vmem:[#allocation5 + $0x8] sm:$0xff]
    %v47 = vld [vmem:[#allocation5 + $0x10] sm:$0xff]
    %v48 = vld [vmem:[#allocation5 + $0x18] sm:$0xff]
    %v49 = vld [vmem:[#allocation5 + $0x20] sm:$0xff]
    %v50 = vld [vmem:[#allocation5 + $0x28] sm:$0xff]
    %v51 = vld [vmem:[#allocation5 + $0x30] sm:$0xff]
    %v52 = vld [vmem:[#allocation5 + $0x38] sm:$0xff]
    %v53 = vld [vmem:[#allocation5 + $0x40] sm:$0xff]
    %v54 = vld [vmem:[#allocation5 + $0x48] sm:$0xff]
    %v55 = vld [vmem:[#allocation5 + $0x50] sm:$0xff]
    %v56 = vld [vmem:[#allocation5 + $0x58] sm:$0xff]
    %v57 = vld [vmem:[#allocation5 + $0x60] sm:$0xff]
    %v58 = vld [vmem:[#allocation5 + $0x68] sm:$0xff]
    %v59 = vld [vmem:[#allocation5 + $0x70] sm:$0xff]
    %v60 = vld [vmem:[#allocation5 + $0x78] sm:$0xff]
    %v61 = vld [vmem:[%s2] sm:$0x1]
    %v63 = vlaneseq
    %v64 = vshrl.u32 %v63, 7
    %v65 = vsub.s32 0, %v64
    %v66 = vrot.slane %v61, %v65
    %68 = vmatprep.subr.mxu0 0.0
    %69 = vmatpush1.msra.mxu0 %v45
    %70 = vmatprep.subr.mxu0 0.0
    %71 = vmatpush1.msra.mxu0 %v46
    %72 = vmatprep.subr.mxu0 0.0
    %73 = vmatpush1.msra.mxu0 %v47
    %74 = vmatprep.subr.mxu0 0.0
    %75 = vmatpush1.msra.mxu0 %v48
    %76 = vmatprep.subr.mxu0 0.0
    %77 = vmatpush1.msra.mxu0 %v49
    %78 = vmatprep.subr.mxu0 0.0
    %79 = vmatpush1.msra.mxu0 %v50
    %80 = vmatprep.subr.mxu0 0.0
    %81 = vmatpush1.msra.mxu0 %v51
    %82 = vmatprep.subr.mxu0 0.0
    %83 = vmatpush1.msra.mxu0 %v52
    %84 = vmatprep.subr.mxu0 0.0
    %85 = vmatpush1.msra.mxu0 %v53
    %86 = vmatprep.subr.mxu0 0.0
    %87 = vmatpush1.msra.mxu0 %v54
    %88 = vmatprep.subr.mxu0 0.0
    %89 = vmatpush1.msra.mxu0 %v55
    %90 = vmatprep.subr.mxu0 0.0
    %91 = vmatpush1.msra.mxu0 %v56
    %92 = vmatprep.subr.mxu0 0.0
    %93 = vmatpush1.msra.mxu0 %v57
    %94 = vmatprep.subr.mxu0 0.0
    %95 = vmatpush1.msra.mxu0 %v58
    %96 = vmatprep.subr.mxu0 0.0
    %97 = vmatpush1.msra.mxu0 %v59
    %98 = vmatprep.subr.mxu0 0.0
    %99 = vmatpush1.msra.mxu0 %v60
    %100 = vmatprep.subr.mxu0 0.0
    %101 = vmatpush1.msra.mxu0 0.0
    %102 = vmatprep.subr.mxu0 0.0
    %103 = vmatpush1.msra.mxu0 0.0
    %104 = vmatprep.subr.mxu0 0.0
    %105 = vmatpush1.msra.mxu0 0.0
    %106 = vmatprep.subr.mxu0 0.0
    %107 = vmatpush1.msra.mxu0 0.0
    %108 = vmatprep.subr.mxu0 0.0
    %109 = vmatpush1.msra.mxu0 0.0
    %110 = vmatprep.subr.mxu0 0.0
    %111 = vmatpush1.msra.mxu0 0.0
    %112 = vmatprep.subr.mxu0 0.0
    %113 = vmatpush1.msra.mxu0 0.0
    %114 = vmatprep.subr.mxu0 0.0
    %115 = vmatpush1.msra.mxu0 0.0
    %116 = vmatprep.subr.mxu0 0.0
    %117 = vmatpush1.msra.mxu0 0.0
    %118 = vmatprep.subr.mxu0 0.0
    %119 = vmatpush1.msra.mxu0 0.0
    %120 = vmatprep.subr.mxu0 0.0
    %121 = vmatpush1.msra.mxu0 0.0
    %122 = vmatprep.subr.mxu0 0.0
    %123 = vmatpush1.msra.mxu0 0.0
    %124 = vmatprep.subr.mxu0 0.0
    %125 = vmatpush1.msra.mxu0 0.0
    %126 = vmatprep.subr.mxu0 0.0
    %127 = vmatpush1.msra.mxu0 0.0
    %128 = vmatprep.subr.mxu0 0.0
    %129 = vmatpush1.msra.mxu0 0.0
    %130 = vmatprep.subr.mxu0 0.0
    %131 = vmatpush1.msra.mxu0 0.0
    %132 = vmatprep.mubr.f32.mxu0 0.0
    %133 = vmatmul.mubr.f32.gmra.mrb[0].mxu0 %v44
    %v134 = vpop.f32.mrb[0].mxu0
    %v135 = vadd.f32 %v66, %v134
    %v136 = vpop.f32.mrb[0].mxu0
    %137 = vdwg.mxu0
    %v138 = vld [vmem:[%s3] sm:$0xff]
    %v139 = vadd.f32 %v135, %v138
    %v140 = vmax.f32 %v139, 0.0
    %141 = vst [vmem:[#allocation7] sm:$0xff] %v140
    // Predicated region
    $region26: #{tpu_custom_call.1} parent=1 // pred_check
      _
    $region27: #{tpu_custom_call.1} parent=1 // pred_check_branch
      %143 = sbr.rel (0) target = $region29
    $region28: #{tpu_custom_call.1} parent=1 // pred_region
      %s145 = ssub.s32 128, 128
      %146 = vsyncadd [#allocation4], %s145
      %s148 = sshll.u32 [#allocation7], 4
      %s149 = int_to_ptr.vmem [resolvable:$true] %s148
      %151 = dma.vmem_to_hbm [thread:$0]  %s149, 128, %s4, [#allocation4]
    $region29: #{tpu_custom_call.1} parent=1 // pred_fallthru
      _
    // Predicated region
    $region30: #{tpu_custom_call.1} parent=1 // pred_check
      _
    $region31: #{tpu_custom_call.1} parent=1 // pred_check_branch
      %153 = sbr.rel (0) target = $region33
    $region32: #{tpu_custom_call.1} parent=1 // pred_region
      %154 = dma.done [#allocation4], 128
    $region33: #{tpu_custom_call.1} parent=1 // pred_fallthru
      _
    %155 = vsyncpa [#allocation3], 1
    %156 = vsyncpa [#allocation6], 1
    %157 = vsyncpa [#allocation4], 1

</llo_original>
